<compile_context>
chip_gen: v7x
topology: tpu7x:2x2x1
jax: 0.10.0
libtpu: 0.0.40
codegen_flags: <defaults>
</compile_context>

<pallas_src>
import jax
import jax.numpy as jnp
from jax import lax
from jax.experimental import pallas as pl
from jax.experimental.pallas import tpu as pltpu


def lstm_cell_kernel(w_ih_ref, w_hh_ref, b_ih_ref, b_hh_ref, x_ref, out_ref):
    """Fused LSTM recurrence for input_size = hidden_size = 1.

    x_ref / out_ref are (B_tile, T) blocks in the caller's batch-major layout;
    the kernel transposes to (T, B_tile) so each recurrence step works on a
    lane-dense batch row vector.  PyTorch gate order in the weights: i, f, g, o.
    """
    Bt, T = x_ref.shape
    half = jnp.float32(0.5)

    # --- scalar parameters (SMEM) ------------------------------------------
    wi_i, wi_f, wi_g, wi_o = (w_ih_ref[0], w_ih_ref[1], w_ih_ref[2], w_ih_ref[3])
    wh_i, wh_f, wh_g, wh_o = (w_hh_ref[0], w_hh_ref[1], w_hh_ref[2], w_hh_ref[3])
    b_i = b_ih_ref[0] + b_hh_ref[0]
    b_f = b_ih_ref[1] + b_hh_ref[1]
    b_g = b_ih_ref[2] + b_hh_ref[2]
    b_o = b_ih_ref[3] + b_hh_ref[3]

    # --- fused input layout change: (Bt, T) -> (T, Bt) ----------------------
    x_tb = jnp.transpose(x_ref[...], (1, 0))            # batch on the lane axis

    # --- hoisted x-affine for all gates (one whole-tile VPU pass) -----------
    # Sigmoid gates (i, f, o) are pre-scaled by 1/2 so that
    #   sigmoid(z) == 0.5 * tanh(z/2) + 0.5
    # turns the three sigmoids + tanh(g) into ONE packed tanh per step.
    pre_i = x_tb * (wi_i * half) + (b_i * half)
    pre_f = x_tb * (wi_f * half) + (b_f * half)
    pre_o = x_tb * (wi_o * half) + (b_o * half)
    pre_g = x_tb * wi_g + b_g

    # Hoisted packing pass: per-step (4, Bt) tiles, sublane order [i, f, o, g].
    # These slices/concats depend only on x, so they sit off the recurrent
    # critical path; the loop body below does no repacking at all.
    pre_steps = [
        jnp.concatenate([pre_i[t:t + 1, :], pre_f[t:t + 1, :],
                         pre_o[t:t + 1, :], pre_g[t:t + 1, :]], axis=0)
        for t in range(T)
    ]

    # Packed recurrent weights (same sublane order, same 1/2 folding) and the
    # tanh -> gate fix-up constants, built once as single (4, Bt) vregs.
    whv = jnp.concatenate([jnp.full((1, Bt), wh_i * half, jnp.float32),
                           jnp.full((1, Bt), wh_f * half, jnp.float32),
                           jnp.full((1, Bt), wh_o * half, jnp.float32),
                           jnp.full((1, Bt), wh_g, jnp.float32)], axis=0)
    gscale = jnp.concatenate([jnp.full((3, Bt), 0.5, jnp.float32),
                              jnp.full((1, Bt), 1.0, jnp.float32)], axis=0)
    gshift = jnp.concatenate([jnp.full((3, Bt), 0.5, jnp.float32),
                              jnp.full((1, Bt), 0.0, jnp.float32)], axis=0)

    # reset_hidden(): h0 = c0 = 0, carried in vregs (no VMEM round trips).
    h = jnp.zeros((1, Bt), jnp.float32)
    c = jnp.zeros((1, Bt), jnp.float32)

    hs = []
    # Fully unrolled recurrence (T is small & static).
    # TODO(synk): for long sequences (T >~ a few hundred) switch to
    # lax.fori_loop(..., unroll=8) / a time-tiled "arbitrary" grid axis; the
    # hoisted pre-activations cost ~2 KiB per step per 128-lane tile, which
    # caps the hoist-everything strategy near T ~ 16K under v7x's 64 MiB VMEM.
    for t in range(T):
        z = pre_steps[t] + h * whv           # packed (4, Bt) FMA
        g4 = jnp.tanh(z) * gscale + gshift   # 1 EUP push: sigmoid(i,f,o) + tanh(g)
        g_i = g4[0:1, :]
        g_f = g4[1:2, :]
        g_o = g4[2:3, :]
        g_g = g4[3:4, :]
        c = g_f * c + g_i * g_g
        h = g_o * jnp.tanh(c)                # 2nd (and last) EUP push of the step
        hs.append(h)

    # Batched writeback: one stack + one transpose + one full-block store
    # (replaces T sublane-masked row stores).
    out_tb = jnp.concatenate(hs, axis=0)                 # (T, Bt)
    out_ref[...] = jnp.transpose(out_tb, (1, 0))         # (Bt, T), caller layout


def one_cell_forward(x, params):
    """Equivalent of OneCell.forward(x) for the default LSTM cell.

    x: (B, T, 1) float32, batch_first.  Returns (B, T, 1): h_t for every step.
    """
    B, T, I = x.shape
    assert I == 1, "OneCell uses input_size=1"

    # Batch tiling: one full-batch block is fine for small B; for large B use
    # >=2 lane tiles so the "parallel" grid axis can shard across both v7x TCs.
    if B >= 512 and B % 256 == 0:
        b_tile = 256
    else:
        b_tile = B
    grid = (B // b_tile,)

    w_ih = params["w_ih"].reshape(4).astype(jnp.float32)   # (4*H, I) = (4, 1)
    w_hh = params["w_hh"].reshape(4).astype(jnp.float32)   # (4*H, H) = (4, 1)
    b_ih = params["b_ih"].reshape(4).astype(jnp.float32)
    b_hh = params["b_hh"].reshape(4).astype(jnp.float32)

    # Free layout ops only: (B, T, 1) -> (B, T).  The (B,T)<->(T,B) shuffles
    # happen inside the kernel (no host-side transpose / pad HBM round trips).
    x2d = x.reshape(B, T).astype(jnp.float32)

    out2d = pl.pallas_call(
        lstm_cell_kernel,
        out_shape=jax.ShapeDtypeStruct((B, T), jnp.float32),
        grid=grid,
        in_specs=[
            pl.BlockSpec(memory_space=pltpu.MemorySpace.SMEM),   # w_ih (4,)
            pl.BlockSpec(memory_space=pltpu.MemorySpace.SMEM),   # w_hh (4,)
            pl.BlockSpec(memory_space=pltpu.MemorySpace.SMEM),   # b_ih (4,)
            pl.BlockSpec(memory_space=pltpu.MemorySpace.SMEM),   # b_hh (4,)
            pl.BlockSpec((b_tile, T), lambda j: (j, 0)),         # x  (b_tile, T)
        ],
        out_specs=pl.BlockSpec((b_tile, T), lambda j: (j, 0)),
        compiler_params=pltpu.CompilerParams(
            dimension_semantics=("parallel",)),
        cost_estimate=pl.CostEstimate(
            flops=60 * B * T,
            transcendentals=2 * B * T,
            bytes_accessed=2 * B * T * 4 + 4 * 4 * 4),
    )(w_ih, w_hh, b_ih, b_hh, x2d)

    return out2d.reshape(B, T, 1)


def one_cell_forward_ref(x, params):
    """Pure-JAX reference (lax.scan) matching torch.nn.LSTM semantics."""
    w_ih = params["w_ih"].reshape(4)
    w_hh = params["w_hh"].reshape(4)
    b = (params["b_ih"] + params["b_hh"]).reshape(4)
    x_tb = jnp.transpose(x[..., 0], (1, 0))   # (T, B)
    B = x_tb.shape[1]

    def step(carry, x_t):
        h, c = carry
        gi = jax.nn.sigmoid(x_t * w_ih[0] + h * w_hh[0] + b[0])
        gf = jax.nn.sigmoid(x_t * w_ih[1] + h * w_hh[1] + b[1])
        gg = jnp.tanh(x_t * w_ih[2] + h * w_hh[2] + b[2])
        go = jax.nn.sigmoid(x_t * w_ih[3] + h * w_hh[3] + b[3])
        c_new = gf * c + gi * gg
        h_new = go * jnp.tanh(c_new)
        return (h_new, c_new), h_new

    init = (jnp.zeros((B,), jnp.float32), jnp.zeros((B,), jnp.float32))
    _, out_tb = lax.scan(step, init, x_tb)
    return jnp.transpose(out_tb, (1, 0))[..., None]


if __name__ == "__main__":
    key = jax.random.PRNGKey(0)
    k_wih, k_whh, k_bih, k_bhh, k_x = jax.random.split(key, 5)

    # nn.LSTM default init: uniform(-1/sqrt(H), 1/sqrt(H)); H=1 -> uniform(-1, 1)
    params = {
        "w_ih": jax.random.uniform(k_wih, (4, 1), jnp.float32, -1.0, 1.0),
        "w_hh": jax.random.uniform(k_whh, (4, 1), jnp.float32, -1.0, 1.0),
        "b_ih": jax.random.uniform(k_bih, (4,), jnp.float32, -1.0, 1.0),
        "b_hh": jax.random.uniform(k_bhh, (4,), jnp.float32, -1.0, 1.0),
    }

    # XOR-style binary sequences: (batch=64 (= default mini_batch), seq=16, input=1)
    B, T = 64, 16
    x = jax.random.bernoulli(k_x, 0.5, (B, T, 1)).astype(jnp.float32)

    out = jax.block_until_ready(one_cell_forward(x, params))
    ref = jax.block_until_ready(one_cell_forward_ref(x, params))

    assert out.shape == (B, T, 1)
    assert jnp.allclose(out, ref, atol=1e-5, rtol=1e-5), "mismatch vs reference"
    print("KERNEL_OK")
</pallas_src>

<mosaic_0001>
module attributes {stable_mosaic.version = 11 : i64} {
  func.func @lstm_cell_kernel(%arg0: i32, %arg1: memref<4xf32, #tpu.memory_space<smem>>, %arg2: memref<4xf32, #tpu.memory_space<smem>>, %arg3: memref<4xf32, #tpu.memory_space<smem>>, %arg4: memref<4xf32, #tpu.memory_space<smem>>, %arg5: memref<64x16xf32, #tpu.memory_space<vmem>>, %arg6: memref<64x16xf32, #tpu.memory_space<vmem>>) attributes {dimension_semantics = [#tpu.dimension_semantics<parallel>], iteration_bounds = array<i64: 1>, scalar_prefetch = 0 : i64, scratch_operands = 0 : i64, tpu.core_type = #tpu.core_type<tc>, window_params = [{transform_indices = @transform_0, window_bounds = array<i64: 4>}, {transform_indices = @transform_1, window_bounds = array<i64: 4>}, {transform_indices = @transform_2, window_bounds = array<i64: 4>}, {transform_indices = @transform_3, window_bounds = array<i64: 4>}, {transform_indices = @transform_4, window_bounds = array<i64: 64, 16>}, {transform_indices = @transform_5, window_bounds = array<i64: 64, 16>}]} {
    %c0 = arith.constant 0 : index
    %0 = memref.load %arg1[%c0] : memref<4xf32, #tpu.memory_space<smem>>
    %c1 = arith.constant 1 : index
    %1 = memref.load %arg1[%c1] : memref<4xf32, #tpu.memory_space<smem>>
    %c2 = arith.constant 2 : index
    %2 = memref.load %arg1[%c2] : memref<4xf32, #tpu.memory_space<smem>>
    %c3 = arith.constant 3 : index
    %3 = memref.load %arg1[%c3] : memref<4xf32, #tpu.memory_space<smem>>
    %c0_0 = arith.constant 0 : index
    %4 = memref.load %arg2[%c0_0] : memref<4xf32, #tpu.memory_space<smem>>
    %c1_1 = arith.constant 1 : index
    %5 = memref.load %arg2[%c1_1] : memref<4xf32, #tpu.memory_space<smem>>
    %c2_2 = arith.constant 2 : index
    %6 = memref.load %arg2[%c2_2] : memref<4xf32, #tpu.memory_space<smem>>
    %c3_3 = arith.constant 3 : index
    %7 = memref.load %arg2[%c3_3] : memref<4xf32, #tpu.memory_space<smem>>
    %c0_4 = arith.constant 0 : index
    %8 = memref.load %arg3[%c0_4] : memref<4xf32, #tpu.memory_space<smem>>
    %c0_5 = arith.constant 0 : index
    %9 = memref.load %arg4[%c0_5] : memref<4xf32, #tpu.memory_space<smem>>
    %10 = arith.addf %8, %9 : f32
    %c1_6 = arith.constant 1 : index
    %11 = memref.load %arg3[%c1_6] : memref<4xf32, #tpu.memory_space<smem>>
    %c1_7 = arith.constant 1 : index
    %12 = memref.load %arg4[%c1_7] : memref<4xf32, #tpu.memory_space<smem>>
    %13 = arith.addf %11, %12 : f32
    %c2_8 = arith.constant 2 : index
    %14 = memref.load %arg3[%c2_8] : memref<4xf32, #tpu.memory_space<smem>>
    %c2_9 = arith.constant 2 : index
    %15 = memref.load %arg4[%c2_9] : memref<4xf32, #tpu.memory_space<smem>>
    %16 = arith.addf %14, %15 : f32
    %c3_10 = arith.constant 3 : index
    %17 = memref.load %arg3[%c3_10] : memref<4xf32, #tpu.memory_space<smem>>
    %c3_11 = arith.constant 3 : index
    %18 = memref.load %arg4[%c3_11] : memref<4xf32, #tpu.memory_space<smem>>
    %19 = arith.addf %17, %18 : f32
    %c0_12 = arith.constant 0 : index
    %c0_13 = arith.constant 0 : index
    %20 = vector.load %arg5[%c0_12, %c0_13] : memref<64x16xf32, #tpu.memory_space<vmem>>, vector<64x16xf32>
    %21 = tpu.transpose %20, [1, 0] : vector<64x16xf32> -> vector<16x64xf32>
    %cst = arith.constant 5.000000e-01 : f32
    %22 = arith.mulf %0, %cst : f32
    %23 = vector.broadcast %22 : f32 to vector<16x64xf32>
    %24 = arith.mulf %21, %23 : vector<16x64xf32>
    %cst_14 = arith.constant 5.000000e-01 : f32
    %25 = arith.mulf %10, %cst_14 : f32
    %26 = vector.broadcast %25 : f32 to vector<16x64xf32>
    %27 = arith.addf %24, %26 : vector<16x64xf32>
    %cst_15 = arith.constant 5.000000e-01 : f32
    %28 = arith.mulf %1, %cst_15 : f32
    %29 = vector.broadcast %28 : f32 to vector<16x64xf32>
    %30 = arith.mulf %21, %29 : vector<16x64xf32>
    %cst_16 = arith.constant 5.000000e-01 : f32
    %31 = arith.mulf %13, %cst_16 : f32
    %32 = vector.broadcast %31 : f32 to vector<16x64xf32>
    %33 = arith.addf %30, %32 : vector<16x64xf32>
    %cst_17 = arith.constant 5.000000e-01 : f32
    %34 = arith.mulf %3, %cst_17 : f32
    %35 = vector.broadcast %34 : f32 to vector<16x64xf32>
    %36 = arith.mulf %21, %35 : vector<16x64xf32>
    %cst_18 = arith.constant 5.000000e-01 : f32
    %37 = arith.mulf %19, %cst_18 : f32
    %38 = vector.broadcast %37 : f32 to vector<16x64xf32>
    %39 = arith.addf %36, %38 : vector<16x64xf32>
    %40 = vector.broadcast %2 : f32 to vector<16x64xf32>
    %41 = arith.mulf %21, %40 : vector<16x64xf32>
    %42 = vector.broadcast %16 : f32 to vector<16x64xf32>
    %43 = arith.addf %41, %42 : vector<16x64xf32>
    %44 = vector.extract_strided_slice %27 {offsets = [0, 0], sizes = [1, 64], strides = [1, 1]} : vector<16x64xf32> to vector<1x64xf32>
    %45 = vector.extract_strided_slice %33 {offsets = [0, 0], sizes = [1, 64], strides = [1, 1]} : vector<16x64xf32> to vector<1x64xf32>
    %46 = vector.extract_strided_slice %39 {offsets = [0, 0], sizes = [1, 64], strides = [1, 1]} : vector<16x64xf32> to vector<1x64xf32>
    %47 = vector.extract_strided_slice %43 {offsets = [0, 0], sizes = [1, 64], strides = [1, 1]} : vector<16x64xf32> to vector<1x64xf32>
    %48 = tpu.concatenate %44, %45, %46, %47 in 0 : vector<1x64xf32>, vector<1x64xf32>, vector<1x64xf32>, vector<1x64xf32> -> vector<4x64xf32>
    %49 = vector.extract_strided_slice %27 {offsets = [1, 0], sizes = [1, 64], strides = [1, 1]} : vector<16x64xf32> to vector<1x64xf32>
    %50 = vector.extract_strided_slice %33 {offsets = [1, 0], sizes = [1, 64], strides = [1, 1]} : vector<16x64xf32> to vector<1x64xf32>
    %51 = vector.extract_strided_slice %39 {offsets = [1, 0], sizes = [1, 64], strides = [1, 1]} : vector<16x64xf32> to vector<1x64xf32>
    %52 = vector.extract_strided_slice %43 {offsets = [1, 0], sizes = [1, 64], strides = [1, 1]} : vector<16x64xf32> to vector<1x64xf32>
    %53 = tpu.concatenate %49, %50, %51, %52 in 0 : vector<1x64xf32>, vector<1x64xf32>, vector<1x64xf32>, vector<1x64xf32> -> vector<4x64xf32>
    %54 = vector.extract_strided_slice %27 {offsets = [2, 0], sizes = [1, 64], strides = [1, 1]} : vector<16x64xf32> to vector<1x64xf32>
    %55 = vector.extract_strided_slice %33 {offsets = [2, 0], sizes = [1, 64], strides = [1, 1]} : vector<16x64xf32> to vector<1x64xf32>
    %56 = vector.extract_strided_slice %39 {offsets = [2, 0], sizes = [1, 64], strides = [1, 1]} : vector<16x64xf32> to vector<1x64xf32>
    %57 = vector.extract_strided_slice %43 {offsets = [2, 0], sizes = [1, 64], strides = [1, 1]} : vector<16x64xf32> to vector<1x64xf32>
    %58 = tpu.concatenate %54, %55, %56, %57 in 0 : vector<1x64xf32>, vector<1x64xf32>, vector<1x64xf32>, vector<1x64xf32> -> vector<4x64xf32>
    %59 = vector.extract_strided_slice %27 {offsets = [3, 0], sizes = [1, 64], strides = [1, 1]} : vector<16x64xf32> to vector<1x64xf32>
    %60 = vector.extract_strided_slice %33 {offsets = [3, 0], sizes = [1, 64], strides = [1, 1]} : vector<16x64xf32> to vector<1x64xf32>
    %61 = vector.extract_strided_slice %39 {offsets = [3, 0], sizes = [1, 64], strides = [1, 1]} : vector<16x64xf32> to vector<1x64xf32>
    %62 = vector.extract_strided_slice %43 {offsets = [3, 0], sizes = [1, 64], strides = [1, 1]} : vector<16x64xf32> to vector<1x64xf32>
    %63 = tpu.concatenate %59, %60, %61, %62 in 0 : vector<1x64xf32>, vector<1x64xf32>, vector<1x64xf32>, vector<1x64xf32> -> vector<4x64xf32>
    %64 = vector.extract_strided_slice %27 {offsets = [4, 0], sizes = [1, 64], strides = [1, 1]} : vector<16x64xf32> to vector<1x64xf32>
    %65 = vector.extract_strided_slice %33 {offsets = [4, 0], sizes = [1, 64], strides = [1, 1]} : vector<16x64xf32> to vector<1x64xf32>
    %66 = vector.extract_strided_slice %39 {offsets = [4, 0], sizes = [1, 64], strides = [1, 1]} : vector<16x64xf32> to vector<1x64xf32>
    %67 = vector.extract_strided_slice %43 {offsets = [4, 0], sizes = [1, 64], strides = [1, 1]} : vector<16x64xf32> to vector<1x64xf32>
    %68 = tpu.concatenate %64, %65, %66, %67 in 0 : vector<1x64xf32>, vector<1x64xf32>, vector<1x64xf32>, vector<1x64xf32> -> vector<4x64xf32>
    %69 = vector.extract_strided_slice %27 {offsets = [5, 0], sizes = [1, 64], strides = [1, 1]} : vector<16x64xf32> to vector<1x64xf32>
    %70 = vector.extract_strided_slice %33 {offsets = [5, 0], sizes = [1, 64], strides = [1, 1]} : vector<16x64xf32> to vector<1x64xf32>
    %71 = vector.extract_strided_slice %39 {offsets = [5, 0], sizes = [1, 64], strides = [1, 1]} : vector<16x64xf32> to vector<1x64xf32>
    %72 = vector.extract_strided_slice %43 {offsets = [5, 0], sizes = [1, 64], strides = [1, 1]} : vector<16x64xf32> to vector<1x64xf32>
    %73 = tpu.concatenate %69, %70, %71, %72 in 0 : vector<1x64xf32>, vector<1x64xf32>, vector<1x64xf32>, vector<1x64xf32> -> vector<4x64xf32>
    %74 = vector.extract_strided_slice %27 {offsets = [6, 0], sizes = [1, 64], strides = [1, 1]} : vector<16x64xf32> to vector<1x64xf32>
    %75 = vector.extract_strided_slice %33 {offsets = [6, 0], sizes = [1, 64], strides = [1, 1]} : vector<16x64xf32> to vector<1x64xf32>
    %76 = vector.extract_strided_slice %39 {offsets = [6, 0], sizes = [1, 64], strides = [1, 1]} : vector<16x64xf32> to vector<1x64xf32>
    %77 = vector.extract_strided_slice %43 {offsets = [6, 0], sizes = [1, 64], strides = [1, 1]} : vector<16x64xf32> to vector<1x64xf32>
    %78 = tpu.concatenate %74, %75, %76, %77 in 0 : vector<1x64xf32>, vector<1x64xf32>, vector<1x64xf32>, vector<1x64xf32> -> vector<4x64xf32>
    %79 = vector.extract_strided_slice %27 {offsets = [7, 0], sizes = [1, 64], strides = [1, 1]} : vector<16x64xf32> to vector<1x64xf32>
    %80 = vector.extract_strided_slice %33 {offsets = [7, 0], sizes = [1, 64], strides = [1, 1]} : vector<16x64xf32> to vector<1x64xf32>
    %81 = vector.extract_strided_slice %39 {offsets = [7, 0], sizes = [1, 64], strides = [1, 1]} : vector<16x64xf32> to vector<1x64xf32>
    %82 = vector.extract_strided_slice %43 {offsets = [7, 0], sizes = [1, 64], strides = [1, 1]} : vector<16x64xf32> to vector<1x64xf32>
    %83 = tpu.concatenate %79, %80, %81, %82 in 0 : vector<1x64xf32>, vector<1x64xf32>, vector<1x64xf32>, vector<1x64xf32> -> vector<4x64xf32>
    %84 = vector.extract_strided_slice %27 {offsets = [8, 0], sizes = [1, 64], strides = [1, 1]} : vector<16x64xf32> to vector<1x64xf32>
    %85 = vector.extract_strided_slice %33 {offsets = [8, 0], sizes = [1, 64], strides = [1, 1]} : vector<16x64xf32> to vector<1x64xf32>
    %86 = vector.extract_strided_slice %39 {offsets = [8, 0], sizes = [1, 64], strides = [1, 1]} : vector<16x64xf32> to vector<1x64xf32>
    %87 = vector.extract_strided_slice %43 {offsets = [8, 0], sizes = [1, 64], strides = [1, 1]} : vector<16x64xf32> to vector<1x64xf32>
    %88 = tpu.concatenate %84, %85, %86, %87 in 0 : vector<1x64xf32>, vector<1x64xf32>, vector<1x64xf32>, vector<1x64xf32> -> vector<4x64xf32>
    %89 = vector.extract_strided_slice %27 {offsets = [9, 0], sizes = [1, 64], strides = [1, 1]} : vector<16x64xf32> to vector<1x64xf32>
    %90 = vector.extract_strided_slice %33 {offsets = [9, 0], sizes = [1, 64], strides = [1, 1]} : vector<16x64xf32> to vector<1x64xf32>
    %91 = vector.extract_strided_slice %39 {offsets = [9, 0], sizes = [1, 64], strides = [1, 1]} : vector<16x64xf32> to vector<1x64xf32>
    %92 = vector.extract_strided_slice %43 {offsets = [9, 0], sizes = [1, 64], strides = [1, 1]} : vector<16x64xf32> to vector<1x64xf32>
    %93 = tpu.concatenate %89, %90, %91, %92 in 0 : vector<1x64xf32>, vector<1x64xf32>, vector<1x64xf32>, vector<1x64xf32> -> vector<4x64xf32>
    %94 = vector.extract_strided_slice %27 {offsets = [10, 0], sizes = [1, 64], strides = [1, 1]} : vector<16x64xf32> to vector<1x64xf32>
    %95 = vector.extract_strided_slice %33 {offsets = [10, 0], sizes = [1, 64], strides = [1, 1]} : vector<16x64xf32> to vector<1x64xf32>
    %96 = vector.extract_strided_slice %39 {offsets = [10, 0], sizes = [1, 64], strides = [1, 1]} : vector<16x64xf32> to vector<1x64xf32>
    %97 = vector.extract_strided_slice %43 {offsets = [10, 0], sizes = [1, 64], strides = [1, 1]} : vector<16x64xf32> to vector<1x64xf32>
    %98 = tpu.concatenate %94, %95, %96, %97 in 0 : vector<1x64xf32>, vector<1x64xf32>, vector<1x64xf32>, vector<1x64xf32> -> vector<4x64xf32>
    %99 = vector.extract_strided_slice %27 {offsets = [11, 0], sizes = [1, 64], strides = [1, 1]} : vector<16x64xf32> to vector<1x64xf32>
    %100 = vector.extract_strided_slice %33 {offsets = [11, 0], sizes = [1, 64], strides = [1, 1]} : vector<16x64xf32> to vector<1x64xf32>
    %101 = vector.extract_strided_slice %39 {offsets = [11, 0], sizes = [1, 64], strides = [1, 1]} : vector<16x64xf32> to vector<1x64xf32>
    %102 = vector.extract_strided_slice %43 {offsets = [11, 0], sizes = [1, 64], strides = [1, 1]} : vector<16x64xf32> to vector<1x64xf32>
    %103 = tpu.concatenate %99, %100, %101, %102 in 0 : vector<1x64xf32>, vector<1x64xf32>, vector<1x64xf32>, vector<1x64xf32> -> vector<4x64xf32>
    %104 = vector.extract_strided_slice %27 {offsets = [12, 0], sizes = [1, 64], strides = [1, 1]} : vector<16x64xf32> to vector<1x64xf32>
    %105 = vector.extract_strided_slice %33 {offsets = [12, 0], sizes = [1, 64], strides = [1, 1]} : vector<16x64xf32> to vector<1x64xf32>
    %106 = vector.extract_strided_slice %39 {offsets = [12, 0], sizes = [1, 64], strides = [1, 1]} : vector<16x64xf32> to vector<1x64xf32>
    %107 = vector.extract_strided_slice %43 {offsets = [12, 0], sizes = [1, 64], strides = [1, 1]} : vector<16x64xf32> to vector<1x64xf32>
    %108 = tpu.concatenate %104, %105, %106, %107 in 0 : vector<1x64xf32>, vector<1x64xf32>, vector<1x64xf32>, vector<1x64xf32> -> vector<4x64xf32>
    %109 = vector.extract_strided_slice %27 {offsets = [13, 0], sizes = [1, 64], strides = [1, 1]} : vector<16x64xf32> to vector<1x64xf32>
    %110 = vector.extract_strided_slice %33 {offsets = [13, 0], sizes = [1, 64], strides = [1, 1]} : vector<16x64xf32> to vector<1x64xf32>
    %111 = vector.extract_strided_slice %39 {offsets = [13, 0], sizes = [1, 64], strides = [1, 1]} : vector<16x64xf32> to vector<1x64xf32>
    %112 = vector.extract_strided_slice %43 {offsets = [13, 0], sizes = [1, 64], strides = [1, 1]} : vector<16x64xf32> to vector<1x64xf32>
    %113 = tpu.concatenate %109, %110, %111, %112 in 0 : vector<1x64xf32>, vector<1x64xf32>, vector<1x64xf32>, vector<1x64xf32> -> vector<4x64xf32>
    %114 = vector.extract_strided_slice %27 {offsets = [14, 0], sizes = [1, 64], strides = [1, 1]} : vector<16x64xf32> to vector<1x64xf32>
    %115 = vector.extract_strided_slice %33 {offsets = [14, 0], sizes = [1, 64], strides = [1, 1]} : vector<16x64xf32> to vector<1x64xf32>
    %116 = vector.extract_strided_slice %39 {offsets = [14, 0], sizes = [1, 64], strides = [1, 1]} : vector<16x64xf32> to vector<1x64xf32>
    %117 = vector.extract_strided_slice %43 {offsets = [14, 0], sizes = [1, 64], strides = [1, 1]} : vector<16x64xf32> to vector<1x64xf32>
    %118 = tpu.concatenate %114, %115, %116, %117 in 0 : vector<1x64xf32>, vector<1x64xf32>, vector<1x64xf32>, vector<1x64xf32> -> vector<4x64xf32>
    %119 = vector.extract_strided_slice %27 {offsets = [15, 0], sizes = [1, 64], strides = [1, 1]} : vector<16x64xf32> to vector<1x64xf32>
    %120 = vector.extract_strided_slice %33 {offsets = [15, 0], sizes = [1, 64], strides = [1, 1]} : vector<16x64xf32> to vector<1x64xf32>
    %121 = vector.extract_strided_slice %39 {offsets = [15, 0], sizes = [1, 64], strides = [1, 1]} : vector<16x64xf32> to vector<1x64xf32>
    %122 = vector.extract_strided_slice %43 {offsets = [15, 0], sizes = [1, 64], strides = [1, 1]} : vector<16x64xf32> to vector<1x64xf32>
    %123 = tpu.concatenate %119, %120, %121, %122 in 0 : vector<1x64xf32>, vector<1x64xf32>, vector<1x64xf32>, vector<1x64xf32> -> vector<4x64xf32>
    %cst_19 = arith.constant 5.000000e-01 : f32
    %124 = arith.mulf %4, %cst_19 : f32
    %125 = vector.broadcast %124 : f32 to vector<1x64xf32>
    %cst_20 = arith.constant 5.000000e-01 : f32
    %126 = arith.mulf %5, %cst_20 : f32
    %127 = vector.broadcast %126 : f32 to vector<1x64xf32>
    %cst_21 = arith.constant 5.000000e-01 : f32
    %128 = arith.mulf %7, %cst_21 : f32
    %129 = vector.broadcast %128 : f32 to vector<1x64xf32>
    %130 = vector.broadcast %6 : f32 to vector<1x64xf32>
    %131 = tpu.concatenate %125, %127, %129, %130 in 0 : vector<1x64xf32>, vector<1x64xf32>, vector<1x64xf32>, vector<1x64xf32> -> vector<4x64xf32>
    %cst_22 = arith.constant 5.000000e-01 : f32
    %132 = vector.broadcast %cst_22 : f32 to vector<3x64xf32>
    %cst_23 = arith.constant 1.000000e+00 : f32
    %133 = vector.broadcast %cst_23 : f32 to vector<1x64xf32>
    %134 = tpu.concatenate %132, %133 in 0 : vector<3x64xf32>, vector<1x64xf32> -> vector<4x64xf32>
    %cst_24 = arith.constant 5.000000e-01 : f32
    %135 = vector.broadcast %cst_24 : f32 to vector<3x64xf32>
    %cst_25 = arith.constant 0.000000e+00 : f32
    %136 = vector.broadcast %cst_25 : f32 to vector<1x64xf32>
    %137 = tpu.concatenate %135, %136 in 0 : vector<3x64xf32>, vector<1x64xf32> -> vector<4x64xf32>
    %cst_26 = arith.constant 0.000000e+00 : f32
    %138 = vector.broadcast %cst_26 : f32 to vector<1x64xf32>
    %cst_27 = arith.constant 0.000000e+00 : f32
    %139 = vector.broadcast %cst_27 : f32 to vector<1x64xf32>
    %140 = vector.broadcast %138 : vector<1x64xf32> to vector<4x64xf32>
    %141 = arith.mulf %140, %131 : vector<4x64xf32>
    %142 = arith.addf %48, %141 : vector<4x64xf32>
    %143 = math.tanh %142 : vector<4x64xf32>
    %144 = arith.mulf %143, %134 : vector<4x64xf32>
    %145 = arith.addf %144, %137 : vector<4x64xf32>
    %146 = vector.extract_strided_slice %145 {offsets = [0, 0], sizes = [1, 64], strides = [1, 1]} : vector<4x64xf32> to vector<1x64xf32>
    %147 = vector.extract_strided_slice %145 {offsets = [1, 0], sizes = [1, 64], strides = [1, 1]} : vector<4x64xf32> to vector<1x64xf32>
    %148 = vector.extract_strided_slice %145 {offsets = [2, 0], sizes = [1, 64], strides = [1, 1]} : vector<4x64xf32> to vector<1x64xf32>
    %149 = vector.extract_strided_slice %145 {offsets = [3, 0], sizes = [1, 64], strides = [1, 1]} : vector<4x64xf32> to vector<1x64xf32>
    %150 = arith.mulf %147, %139 : vector<1x64xf32>
    %151 = arith.mulf %146, %149 : vector<1x64xf32>
    %152 = arith.addf %150, %151 : vector<1x64xf32>
    %153 = math.tanh %152 : vector<1x64xf32>
    %154 = arith.mulf %148, %153 : vector<1x64xf32>
    %155 = vector.broadcast %154 : vector<1x64xf32> to vector<4x64xf32>
    %156 = arith.mulf %155, %131 : vector<4x64xf32>
    %157 = arith.addf %53, %156 : vector<4x64xf32>
    %158 = math.tanh %157 : vector<4x64xf32>
    %159 = arith.mulf %158, %134 : vector<4x64xf32>
    %160 = arith.addf %159, %137 : vector<4x64xf32>
    %161 = vector.extract_strided_slice %160 {offsets = [0, 0], sizes = [1, 64], strides = [1, 1]} : vector<4x64xf32> to vector<1x64xf32>
    %162 = vector.extract_strided_slice %160 {offsets = [1, 0], sizes = [1, 64], strides = [1, 1]} : vector<4x64xf32> to vector<1x64xf32>
    %163 = vector.extract_strided_slice %160 {offsets = [2, 0], sizes = [1, 64], strides = [1, 1]} : vector<4x64xf32> to vector<1x64xf32>
    %164 = vector.extract_strided_slice %160 {offsets = [3, 0], sizes = [1, 64], strides = [1, 1]} : vector<4x64xf32> to vector<1x64xf32>
    %165 = arith.mulf %162, %152 : vector<1x64xf32>
    %166 = arith.mulf %161, %164 : vector<1x64xf32>
    %167 = arith.addf %165, %166 : vector<1x64xf32>
    %168 = math.tanh %167 : vector<1x64xf32>
    %169 = arith.mulf %163, %168 : vector<1x64xf32>
    %170 = vector.broadcast %169 : vector<1x64xf32> to vector<4x64xf32>
    %171 = arith.mulf %170, %131 : vector<4x64xf32>
    %172 = arith.addf %58, %171 : vector<4x64xf32>
    %173 = math.tanh %172 : vector<4x64xf32>
    %174 = arith.mulf %173, %134 : vector<4x64xf32>
    %175 = arith.addf %174, %137 : vector<4x64xf32>
    %176 = vector.extract_strided_slice %175 {offsets = [0, 0], sizes = [1, 64], strides = [1, 1]} : vector<4x64xf32> to vector<1x64xf32>
    %177 = vector.extract_strided_slice %175 {offsets = [1, 0], sizes = [1, 64], strides = [1, 1]} : vector<4x64xf32> to vector<1x64xf32>
    %178 = vector.extract_strided_slice %175 {offsets = [2, 0], sizes = [1, 64], strides = [1, 1]} : vector<4x64xf32> to vector<1x64xf32>
    %179 = vector.extract_strided_slice %175 {offsets = [3, 0], sizes = [1, 64], strides = [1, 1]} : vector<4x64xf32> to vector<1x64xf32>
    %180 = arith.mulf %177, %167 : vector<1x64xf32>
    %181 = arith.mulf %176, %179 : vector<1x64xf32>
    %182 = arith.addf %180, %181 : vector<1x64xf32>
    %183 = math.tanh %182 : vector<1x64xf32>
    %184 = arith.mulf %178, %183 : vector<1x64xf32>
    %185 = vector.broadcast %184 : vector<1x64xf32> to vector<4x64xf32>
    %186 = arith.mulf %185, %131 : vector<4x64xf32>
    %187 = arith.addf %63, %186 : vector<4x64xf32>
    %188 = math.tanh %187 : vector<4x64xf32>
    %189 = arith.mulf %188, %134 : vector<4x64xf32>
    %190 = arith.addf %189, %137 : vector<4x64xf32>
    %191 = vector.extract_strided_slice %190 {offsets = [0, 0], sizes = [1, 64], strides = [1, 1]} : vector<4x64xf32> to vector<1x64xf32>
    %192 = vector.extract_strided_slice %190 {offsets = [1, 0], sizes = [1, 64], strides = [1, 1]} : vector<4x64xf32> to vector<1x64xf32>
    %193 = vector.extract_strided_slice %190 {offsets = [2, 0], sizes = [1, 64], strides = [1, 1]} : vector<4x64xf32> to vector<1x64xf32>
    %194 = vector.extract_strided_slice %190 {offsets = [3, 0], sizes = [1, 64], strides = [1, 1]} : vector<4x64xf32> to vector<1x64xf32>
    %195 = arith.mulf %192, %182 : vector<1x64xf32>
    %196 = arith.mulf %191, %194 : vector<1x64xf32>
    %197 = arith.addf %195, %196 : vector<1x64xf32>
    %198 = math.tanh %197 : vector<1x64xf32>
    %199 = arith.mulf %193, %198 : vector<1x64xf32>
    %200 = vector.broadcast %199 : vector<1x64xf32> to vector<4x64xf32>
    %201 = arith.mulf %200, %131 : vector<4x64xf32>
    %202 = arith.addf %68, %201 : vector<4x64xf32>
    %203 = math.tanh %202 : vector<4x64xf32>
    %204 = arith.mulf %203, %134 : vector<4x64xf32>
    %205 = arith.addf %204, %137 : vector<4x64xf32>
    %206 = vector.extract_strided_slice %205 {offsets = [0, 0], sizes = [1, 64], strides = [1, 1]} : vector<4x64xf32> to vector<1x64xf32>
    %207 = vector.extract_strided_slice %205 {offsets = [1, 0], sizes = [1, 64], strides = [1, 1]} : vector<4x64xf32> to vector<1x64xf32>
    %208 = vector.extract_strided_slice %205 {offsets = [2, 0], sizes = [1, 64], strides = [1, 1]} : vector<4x64xf32> to vector<1x64xf32>
    %209 = vector.extract_strided_slice %205 {offsets = [3, 0], sizes = [1, 64], strides = [1, 1]} : vector<4x64xf32> to vector<1x64xf32>
    %210 = arith.mulf %207, %197 : vector<1x64xf32>
    %211 = arith.mulf %206, %209 : vector<1x64xf32>
    %212 = arith.addf %210, %211 : vector<1x64xf32>
    %213 = math.tanh %212 : vector<1x64xf32>
    %214 = arith.mulf %208, %213 : vector<1x64xf32>
    %215 = vector.broadcast %214 : vector<1x64xf32> to vector<4x64xf32>
    %216 = arith.mulf %215, %131 : vector<4x64xf32>
    %217 = arith.addf %73, %216 : vector<4x64xf32>
    %218 = math.tanh %217 : vector<4x64xf32>
    %219 = arith.mulf %218, %134 : vector<4x64xf32>
    %220 = arith.addf %219, %137 : vector<4x64xf32>
    %221 = vector.extract_strided_slice %220 {offsets = [0, 0], sizes = [1, 64], strides = [1, 1]} : vector<4x64xf32> to vector<1x64xf32>
    %222 = vector.extract_strided_slice %220 {offsets = [1, 0], sizes = [1, 64], strides = [1, 1]} : vector<4x64xf32> to vector<1x64xf32>
    %223 = vector.extract_strided_slice %220 {offsets = [2, 0], sizes = [1, 64], strides = [1, 1]} : vector<4x64xf32> to vector<1x64xf32>
    %224 = vector.extract_strided_slice %220 {offsets = [3, 0], sizes = [1, 64], strides = [1, 1]} : vector<4x64xf32> to vector<1x64xf32>
    %225 = arith.mulf %222, %212 : vector<1x64xf32>
    %226 = arith.mulf %221, %224 : vector<1x64xf32>
    %227 = arith.addf %225, %226 : vector<1x64xf32>
    %228 = math.tanh %227 : vector<1x64xf32>
    %229 = arith.mulf %223, %228 : vector<1x64xf32>
    %230 = vector.broadcast %229 : vector<1x64xf32> to vector<4x64xf32>
    %231 = arith.mulf %230, %131 : vector<4x64xf32>
    %232 = arith.addf %78, %231 : vector<4x64xf32>
    %233 = math.tanh %232 : vector<4x64xf32>
    %234 = arith.mulf %233, %134 : vector<4x64xf32>
    %235 = arith.addf %234, %137 : vector<4x64xf32>
    %236 = vector.extract_strided_slice %235 {offsets = [0, 0], sizes = [1, 64], strides = [1, 1]} : vector<4x64xf32> to vector<1x64xf32>
    %237 = vector.extract_strided_slice %235 {offsets = [1, 0], sizes = [1, 64], strides = [1, 1]} : vector<4x64xf32> to vector<1x64xf32>
    %238 = vector.extract_strided_slice %235 {offsets = [2, 0], sizes = [1, 64], strides = [1, 1]} : vector<4x64xf32> to vector<1x64xf32>
    %239 = vector.extract_strided_slice %235 {offsets = [3, 0], sizes = [1, 64], strides = [1, 1]} : vector<4x64xf32> to vector<1x64xf32>
    %240 = arith.mulf %237, %227 : vector<1x64xf32>
    %241 = arith.mulf %236, %239 : vector<1x64xf32>
    %242 = arith.addf %240, %241 : vector<1x64xf32>
    %243 = math.tanh %242 : vector<1x64xf32>
    %244 = arith.mulf %238, %243 : vector<1x64xf32>
    %245 = vector.broadcast %244 : vector<1x64xf32> to vector<4x64xf32>
    %246 = arith.mulf %245, %131 : vector<4x64xf32>
    %247 = arith.addf %83, %246 : vector<4x64xf32>
    %248 = math.tanh %247 : vector<4x64xf32>
    %249 = arith.mulf %248, %134 : vector<4x64xf32>
    %250 = arith.addf %249, %137 : vector<4x64xf32>
    %251 = vector.extract_strided_slice %250 {offsets = [0, 0], sizes = [1, 64], strides = [1, 1]} : vector<4x64xf32> to vector<1x64xf32>
    %252 = vector.extract_strided_slice %250 {offsets = [1, 0], sizes = [1, 64], strides = [1, 1]} : vector<4x64xf32> to vector<1x64xf32>
    %253 = vector.extract_strided_slice %250 {offsets = [2, 0], sizes = [1, 64], strides = [1, 1]} : vector<4x64xf32> to vector<1x64xf32>
    %254 = vector.extract_strided_slice %250 {offsets = [3, 0], sizes = [1, 64], strides = [1, 1]} : vector<4x64xf32> to vector<1x64xf32>
    %255 = arith.mulf %252, %242 : vector<1x64xf32>
    %256 = arith.mulf %251, %254 : vector<1x64xf32>
    %257 = arith.addf %255, %256 : vector<1x64xf32>
    %258 = math.tanh %257 : vector<1x64xf32>
    %259 = arith.mulf %253, %258 : vector<1x64xf32>
    %260 = vector.broadcast %259 : vector<1x64xf32> to vector<4x64xf32>
    %261 = arith.mulf %260, %131 : vector<4x64xf32>
    %262 = arith.addf %88, %261 : vector<4x64xf32>
    %263 = math.tanh %262 : vector<4x64xf32>
    %264 = arith.mulf %263, %134 : vector<4x64xf32>
    %265 = arith.addf %264, %137 : vector<4x64xf32>
    %266 = vector.extract_strided_slice %265 {offsets = [0, 0], sizes = [1, 64], strides = [1, 1]} : vector<4x64xf32> to vector<1x64xf32>
    %267 = vector.extract_strided_slice %265 {offsets = [1, 0], sizes = [1, 64], strides = [1, 1]} : vector<4x64xf32> to vector<1x64xf32>
    %268 = vector.extract_strided_slice %265 {offsets = [2, 0], sizes = [1, 64], strides = [1, 1]} : vector<4x64xf32> to vector<1x64xf32>
    %269 = vector.extract_strided_slice %265 {offsets = [3, 0], sizes = [1, 64], strides = [1, 1]} : vector<4x64xf32> to vector<1x64xf32>
    %270 = arith.mulf %267, %257 : vector<1x64xf32>
    %271 = arith.mulf %266, %269 : vector<1x64xf32>
    %272 = arith.addf %270, %271 : vector<1x64xf32>
    %273 = math.tanh %272 : vector<1x64xf32>
    %274 = arith.mulf %268, %273 : vector<1x64xf32>
    %275 = vector.broadcast %274 : vector<1x64xf32> to vector<4x64xf32>
    %276 = arith.mulf %275, %131 : vector<4x64xf32>
    %277 = arith.addf %93, %276 : vector<4x64xf32>
    %278 = math.tanh %277 : vector<4x64xf32>
    %279 = arith.mulf %278, %134 : vector<4x64xf32>
    %280 = arith.addf %279, %137 : vector<4x64xf32>
    %281 = vector.extract_strided_slice %280 {offsets = [0, 0], sizes = [1, 64], strides = [1, 1]} : vector<4x64xf32> to vector<1x64xf32>
    %282 = vector.extract_strided_slice %280 {offsets = [1, 0], sizes = [1, 64], strides = [1, 1]} : vector<4x64xf32> to vector<1x64xf32>
    %283 = vector.extract_strided_slice %280 {offsets = [2, 0], sizes = [1, 64], strides = [1, 1]} : vector<4x64xf32> to vector<1x64xf32>
    %284 = vector.extract_strided_slice %280 {offsets = [3, 0], sizes = [1, 64], strides = [1, 1]} : vector<4x64xf32> to vector<1x64xf32>
    %285 = arith.mulf %282, %272 : vector<1x64xf32>
    %286 = arith.mulf %281, %284 : vector<1x64xf32>
    %287 = arith.addf %285, %286 : vector<1x64xf32>
    %288 = math.tanh %287 : vector<1x64xf32>
    %289 = arith.mulf %283, %288 : vector<1x64xf32>
    %290 = vector.broadcast %289 : vector<1x64xf32> to vector<4x64xf32>
    %291 = arith.mulf %290, %131 : vector<4x64xf32>
    %292 = arith.addf %98, %291 : vector<4x64xf32>
    %293 = math.tanh %292 : vector<4x64xf32>
    %294 = arith.mulf %293, %134 : vector<4x64xf32>
    %295 = arith.addf %294, %137 : vector<4x64xf32>
    %296 = vector.extract_strided_slice %295 {offsets = [0, 0], sizes = [1, 64], strides = [1, 1]} : vector<4x64xf32> to vector<1x64xf32>
    %297 = vector.extract_strided_slice %295 {offsets = [1, 0], sizes = [1, 64], strides = [1, 1]} : vector<4x64xf32> to vector<1x64xf32>
    %298 = vector.extract_strided_slice %295 {offsets = [2, 0], sizes = [1, 64], strides = [1, 1]} : vector<4x64xf32> to vector<1x64xf32>
    %299 = vector.extract_strided_slice %295 {offsets = [3, 0], sizes = [1, 64], strides = [1, 1]} : vector<4x64xf32> to vector<1x64xf32>
    %300 = arith.mulf %297, %287 : vector<1x64xf32>
    %301 = arith.mulf %296, %299 : vector<1x64xf32>
    %302 = arith.addf %300, %301 : vector<1x64xf32>
    %303 = math.tanh %302 : vector<1x64xf32>
    %304 = arith.mulf %298, %303 : vector<1x64xf32>
    %305 = vector.broadcast %304 : vector<1x64xf32> to vector<4x64xf32>
    %306 = arith.mulf %305, %131 : vector<4x64xf32>
    %307 = arith.addf %103, %306 : vector<4x64xf32>
    %308 = math.tanh %307 : vector<4x64xf32>
    %309 = arith.mulf %308, %134 : vector<4x64xf32>
    %310 = arith.addf %309, %137 : vector<4x64xf32>
    %311 = vector.extract_strided_slice %310 {offsets = [0, 0], sizes = [1, 64], strides = [1, 1]} : vector<4x64xf32> to vector<1x64xf32>
    %312 = vector.extract_strided_slice %310 {offsets = [1, 0], sizes = [1, 64], strides = [1, 1]} : vector<4x64xf32> to vector<1x64xf32>
    %313 = vector.extract_strided_slice %310 {offsets = [2, 0], sizes = [1, 64], strides = [1, 1]} : vector<4x64xf32> to vector<1x64xf32>
    %314 = vector.extract_strided_slice %310 {offsets = [3, 0], sizes = [1, 64], strides = [1, 1]} : vector<4x64xf32> to vector<1x64xf32>
    %315 = arith.mulf %312, %302 : vector<1x64xf32>
    %316 = arith.mulf %311, %314 : vector<1x64xf32>
    %317 = arith.addf %315, %316 : vector<1x64xf32>
    %318 = math.tanh %317 : vector<1x64xf32>
    %319 = arith.mulf %313, %318 : vector<1x64xf32>
    %320 = vector.broadcast %319 : vector<1x64xf32> to vector<4x64xf32>
    %321 = arith.mulf %320, %131 : vector<4x64xf32>
    %322 = arith.addf %108, %321 : vector<4x64xf32>
    %323 = math.tanh %322 : vector<4x64xf32>
    %324 = arith.mulf %323, %134 : vector<4x64xf32>
    %325 = arith.addf %324, %137 : vector<4x64xf32>
    %326 = vector.extract_strided_slice %325 {offsets = [0, 0], sizes = [1, 64], strides = [1, 1]} : vector<4x64xf32> to vector<1x64xf32>
    %327 = vector.extract_strided_slice %325 {offsets = [1, 0], sizes = [1, 64], strides = [1, 1]} : vector<4x64xf32> to vector<1x64xf32>
    %328 = vector.extract_strided_slice %325 {offsets = [2, 0], sizes = [1, 64], strides = [1, 1]} : vector<4x64xf32> to vector<1x64xf32>
    %329 = vector.extract_strided_slice %325 {offsets = [3, 0], sizes = [1, 64], strides = [1, 1]} : vector<4x64xf32> to vector<1x64xf32>
    %330 = arith.mulf %327, %317 : vector<1x64xf32>
    %331 = arith.mulf %326, %329 : vector<1x64xf32>
    %332 = arith.addf %330, %331 : vector<1x64xf32>
    %333 = math.tanh %332 : vector<1x64xf32>
    %334 = arith.mulf %328, %333 : vector<1x64xf32>
    %335 = vector.broadcast %334 : vector<1x64xf32> to vector<4x64xf32>
    %336 = arith.mulf %335, %131 : vector<4x64xf32>
    %337 = arith.addf %113, %336 : vector<4x64xf32>
    %338 = math.tanh %337 : vector<4x64xf32>
    %339 = arith.mulf %338, %134 : vector<4x64xf32>
    %340 = arith.addf %339, %137 : vector<4x64xf32>
    %341 = vector.extract_strided_slice %340 {offsets = [0, 0], sizes = [1, 64], strides = [1, 1]} : vector<4x64xf32> to vector<1x64xf32>
    %342 = vector.extract_strided_slice %340 {offsets = [1, 0], sizes = [1, 64], strides = [1, 1]} : vector<4x64xf32> to vector<1x64xf32>
    %343 = vector.extract_strided_slice %340 {offsets = [2, 0], sizes = [1, 64], strides = [1, 1]} : vector<4x64xf32> to vector<1x64xf32>
    %344 = vector.extract_strided_slice %340 {offsets = [3, 0], sizes = [1, 64], strides = [1, 1]} : vector<4x64xf32> to vector<1x64xf32>
    %345 = arith.mulf %342, %332 : vector<1x64xf32>
    %346 = arith.mulf %341, %344 : vector<1x64xf32>
    %347 = arith.addf %345, %346 : vector<1x64xf32>
    %348 = math.tanh %347 : vector<1x64xf32>
    %349 = arith.mulf %343, %348 : vector<1x64xf32>
    %350 = vector.broadcast %349 : vector<1x64xf32> to vector<4x64xf32>
    %351 = arith.mulf %350, %131 : vector<4x64xf32>
    %352 = arith.addf %118, %351 : vector<4x64xf32>
    %353 = math.tanh %352 : vector<4x64xf32>
    %354 = arith.mulf %353, %134 : vector<4x64xf32>
    %355 = arith.addf %354, %137 : vector<4x64xf32>
    %356 = vector.extract_strided_slice %355 {offsets = [0, 0], sizes = [1, 64], strides = [1, 1]} : vector<4x64xf32> to vector<1x64xf32>
    %357 = vector.extract_strided_slice %355 {offsets = [1, 0], sizes = [1, 64], strides = [1, 1]} : vector<4x64xf32> to vector<1x64xf32>
    %358 = vector.extract_strided_slice %355 {offsets = [2, 0], sizes = [1, 64], strides = [1, 1]} : vector<4x64xf32> to vector<1x64xf32>
    %359 = vector.extract_strided_slice %355 {offsets = [3, 0], sizes = [1, 64], strides = [1, 1]} : vector<4x64xf32> to vector<1x64xf32>
    %360 = arith.mulf %357, %347 : vector<1x64xf32>
    %361 = arith.mulf %356, %359 : vector<1x64xf32>
    %362 = arith.addf %360, %361 : vector<1x64xf32>
    %363 = math.tanh %362 : vector<1x64xf32>
    %364 = arith.mulf %358, %363 : vector<1x64xf32>
    %365 = vector.broadcast %364 : vector<1x64xf32> to vector<4x64xf32>
    %366 = arith.mulf %365, %131 : vector<4x64xf32>
    %367 = arith.addf %123, %366 : vector<4x64xf32>
    %368 = math.tanh %367 : vector<4x64xf32>
    %369 = arith.mulf %368, %134 : vector<4x64xf32>
    %370 = arith.addf %369, %137 : vector<4x64xf32>
    %371 = vector.extract_strided_slice %370 {offsets = [0, 0], sizes = [1, 64], strides = [1, 1]} : vector<4x64xf32> to vector<1x64xf32>
    %372 = vector.extract_strided_slice %370 {offsets = [1, 0], sizes = [1, 64], strides = [1, 1]} : vector<4x64xf32> to vector<1x64xf32>
    %373 = vector.extract_strided_slice %370 {offsets = [2, 0], sizes = [1, 64], strides = [1, 1]} : vector<4x64xf32> to vector<1x64xf32>
    %374 = vector.extract_strided_slice %370 {offsets = [3, 0], sizes = [1, 64], strides = [1, 1]} : vector<4x64xf32> to vector<1x64xf32>
    %375 = arith.mulf %372, %362 : vector<1x64xf32>
    %376 = arith.mulf %371, %374 : vector<1x64xf32>
    %377 = arith.addf %375, %376 : vector<1x64xf32>
    %378 = math.tanh %377 : vector<1x64xf32>
    %379 = arith.mulf %373, %378 : vector<1x64xf32>
    %380 = tpu.concatenate %154, %169, %184, %199, %214, %229, %244, %259, %274, %289, %304, %319, %334, %349, %364, %379 in 0 : vector<1x64xf32>, vector<1x64xf32>, vector<1x64xf32>, vector<1x64xf32>, vector<1x64xf32>, vector<1x64xf32>, vector<1x64xf32>, vector<1x64xf32>, vector<1x64xf32>, vector<1x64xf32>, vector<1x64xf32>, vector<1x64xf32>, vector<1x64xf32>, vector<1x64xf32>, vector<1x64xf32>, vector<1x64xf32> -> vector<16x64xf32>
    %381 = tpu.transpose %380, [1, 0] : vector<16x64xf32> -> vector<64x16xf32>
    %c0_28 = arith.constant 0 : index
    %c0_29 = arith.constant 0 : index
    %382 = vector.load %arg6[%c0_28, %c0_29] : memref<64x16xf32, #tpu.memory_space<vmem>>, vector<64x16xf32>
    tpu.vector_store %arg6[%c0_28, %c0_29], %381 {strides = array<i32>} : memref<64x16xf32, #tpu.memory_space<vmem>>, vector<64x16xf32>,
    return
  }
  func.func @transform_0(%arg0: i32) -> i32 {
    %c0_i32 = arith.constant 0 : i32
    %c0_i32_0 = arith.constant 0 : i32
    return %c0_i32 : i32
  }
  func.func @transform_1(%arg0: i32) -> i32 {
    %c0_i32 = arith.constant 0 : i32
    %c0_i32_0 = arith.constant 0 : i32
    return %c0_i32 : i32
  }
  func.func @transform_2(%arg0: i32) -> i32 {
    %c0_i32 = arith.constant 0 : i32
    %c0_i32_0 = arith.constant 0 : i32
    return %c0_i32 : i32
  }
  func.func @transform_3(%arg0: i32) -> i32 {
    %c0_i32 = arith.constant 0 : i32
    %c0_i32_0 = arith.constant 0 : i32
    return %c0_i32 : i32
  }
  func.func @transform_4(%arg0: i32) -> (i32, i32) {
    %c0_i32 = arith.constant 0 : i32
    %c0_i32_0 = arith.constant 0 : i32
    return %arg0, %c0_i32 : i32, i32
  }
  func.func @transform_5(%arg0: i32) -> (i32, i32) {
    %c0_i32 = arith.constant 0 : i32
    %c0_i32_0 = arith.constant 0 : i32
    return %arg0, %c0_i32 : i32, i32
  }
}

</mosaic_0001>

<llo_original>
// kernel: tpu_custom_call.1
$region0: #{tpu_custom_call.1}
  #allocation0 [shape = 'u32[]', space=smem, size = 0x4, offset = 0x4, fixed_abs, tag = 'smem constant byte address 0x4 - core index']
  #allocation1 [shape = 'u32[144,128]{1,0:T(1,128)}', space=vmem, size = 0x12000, scoped, tag = 'internal scratch']
  %s0 = inlined_call_operand.vmem [shape: f32[4], index: 0, kind: input, shape index: {}]
  %s1 = inlined_call_operand.vmem [shape: f32[4], index: 1, kind: input, shape index: {}]
  %s2 = inlined_call_operand.vmem [shape: f32[4], index: 2, kind: input, shape index: {}]
  %s3 = inlined_call_operand.vmem [shape: f32[4], index: 3, kind: input, shape index: {}]
  %s4 = inlined_call_operand.vmem [shape: f32[64,16], index: 4, kind: input, shape index: {}]
  %s5 = inlined_call_operand.vmem [shape: f32[64,16], index: 5, kind: output, shape index: {}]
  %s6 = sld [smem:[#allocation0]]
  $region46: #{tpu_custom_call.1} parent=0
    _
  %s8 = ssub.s32 1, %s6
  %s9 = scalar_select 0, %s8, %s6
  $region1: #{tpu_custom_call.1} parent=0
    #allocation2 [shape = 'u8[512]{0}', space=smem, size = 0x200, scoped, tag = 'input window, operand 0, single buffered']
    #allocation3 [shape = 's32[1]{0}', space=sflag, size = 0x4, scoped, tag = 'scoped memory for tpu_custom_call.1']
    #allocation4 [shape = 'u8[512]{0}', space=smem, size = 0x200, scoped, tag = 'input window, operand 1, single buffered']
    #allocation5 [shape = 's32[1]{0}', space=sflag, size = 0x4, scoped, tag = 'scoped memory for tpu_custom_call.1']
    #allocation6 [shape = 'u8[512]{0}', space=smem, size = 0x200, scoped, tag = 'input window, operand 2, single buffered']
    #allocation7 [shape = 'u8[512]{0}', space=smem, size = 0x200, scoped, tag = 'input window, operand 3, single buffered']
    #allocation8 [shape = 's32[1]{0}', space=sflag, size = 0x4, scoped, tag = 'scoped memory for tpu_custom_call.1']
    %10 = vsyncpa [#allocation3], 0
    %11 = vsyncpa [#allocation5], 0
    %12 = vsyncpa [#allocation8], 0
    // Predicated region
    $region2: #{tpu_custom_call.1} parent=1 // pred_check
      _
    $region3: #{tpu_custom_call.1} parent=1 // pred_check_branch
      %14 = sbr.rel (0) target = $region5
    $region4: #{tpu_custom_call.1} parent=1 // pred_region
      %s16 = ssub.s32 16, 16
      %17 = vsyncadd [#allocation3], %s16
      %s19 = sshll.u32 %s0, 4
      %s20 = int_to_ptr.vmem [resolvable:$true] %s19
      %22 = dma.vmem_to_smem %s20, 16, [#allocation2], [#allocation3]
    $region5: #{tpu_custom_call.1} parent=1 // pred_fallthru
      _
    // Predicated region
    $region6: #{tpu_custom_call.1} parent=1 // pred_check
      _
    $region7: #{tpu_custom_call.1} parent=1 // pred_check_branch
      %24 = sbr.rel (0) target = $region9
    $region8: #{tpu_custom_call.1} parent=1 // pred_region
      %s26 = ssub.s32 16, 16
      %27 = vsyncadd [#allocation5], %s26
      %s29 = sshll.u32 %s1, 4
      %s30 = int_to_ptr.vmem [resolvable:$true] %s29
      %32 = dma.vmem_to_smem %s30, 16, [#allocation4], [#allocation5]
    $region9: #{tpu_custom_call.1} parent=1 // pred_fallthru
      _
    // Predicated region
    $region10: #{tpu_custom_call.1} parent=1 // pred_check
      _
    $region11: #{tpu_custom_call.1} parent=1 // pred_check_branch
      %34 = sbr.rel (0) target = $region13
    $region12: #{tpu_custom_call.1} parent=1 // pred_region
      %s36 = ssub.s32 16, 16
      %37 = vsyncadd [#allocation5], %s36
      %s39 = sshll.u32 %s2, 4
      %s40 = int_to_ptr.vmem [resolvable:$true] %s39
      %42 = dma.vmem_to_smem %s40, 16, [#allocation6], [#allocation5]
    $region13: #{tpu_custom_call.1} parent=1 // pred_fallthru
      _
    // Predicated region
    $region14: #{tpu_custom_call.1} parent=1 // pred_check
      _
    $region15: #{tpu_custom_call.1} parent=1 // pred_check_branch
      %44 = sbr.rel (0) target = $region17
    $region16: #{tpu_custom_call.1} parent=1 // pred_region
      %s46 = ssub.s32 16, 16
      %47 = vsyncadd [#allocation8], %s46
      %s49 = sshll.u32 %s3, 4
      %s50 = int_to_ptr.vmem [resolvable:$true] %s49
      %52 = dma.vmem_to_smem %s50, 16, [#allocation7], [#allocation8]
    $region17: #{tpu_custom_call.1} parent=1 // pred_fallthru
      _
    // Predicated region
    $region18: #{tpu_custom_call.1} parent=1 // pred_check
      _
    $region19: #{tpu_custom_call.1} parent=1 // pred_check_branch
      %54 = sbr.rel (0) target = $region21
    $region20: #{tpu_custom_call.1} parent=1 // pred_region
      _
    $region21: #{tpu_custom_call.1} parent=1 // pred_fallthru
      _
    // Predicated region
    $region22: #{tpu_custom_call.1} parent=1 // pred_check
      _
    $region23: #{tpu_custom_call.1} parent=1 // pred_check_branch
      %56 = sbr.rel (0) target = $region25
    $region24: #{tpu_custom_call.1} parent=1 // pred_region
      %57 = dma.done [#allocation3], 16
    $region25: #{tpu_custom_call.1} parent=1 // pred_fallthru
      _
    // Predicated region
    $region26: #{tpu_custom_call.1} parent=1 // pred_check
      _
    $region27: #{tpu_custom_call.1} parent=1 // pred_check_branch
      %59 = sbr.rel (0) target = $region29
    $region28: #{tpu_custom_call.1} parent=1 // pred_region
      %60 = dma.done [#allocation5], 16
    $region29: #{tpu_custom_call.1} parent=1 // pred_fallthru
      _
    // Predicated region
    $region30: #{tpu_custom_call.1} parent=1 // pred_check
      _
    $region31: #{tpu_custom_call.1} parent=1 // pred_check_branch
      %62 = sbr.rel (0) target = $region33
    $region32: #{tpu_custom_call.1} parent=1 // pred_region
      %63 = dma.done [#allocation5], 16
    $region33: #{tpu_custom_call.1} parent=1 // pred_fallthru
      _
    // Predicated region
    $region34: #{tpu_custom_call.1} parent=1 // pred_check
      _
    $region35: #{tpu_custom_call.1} parent=1 // pred_check_branch
      %65 = sbr.rel (0) target = $region37
    $region36: #{tpu_custom_call.1} parent=1 // pred_region
      %66 = dma.done [#allocation8], 16
    $region37: #{tpu_custom_call.1} parent=1 // pred_fallthru
      _
    %67 = sfence
    %s68 = sld [smem:[#allocation2]]
    %s69 = sld [smem:[#allocation2 + $0x1]]
    %s70 = sld [smem:[#allocation2 + $0x2]]
    %s71 = sld [smem:[#allocation2 + $0x3]]
    %s72 = sld [smem:[#allocation4]]
    %s73 = sld [smem:[#allocation4 + $0x1]]
    %s74 = sld [smem:[#allocation4 + $0x2]]
    %s75 = sld [smem:[#allocation4 + $0x3]]
    %s76 = sld [smem:[#allocation6]]
    %s77 = sld [smem:[#allocation7]]
    %s78 = sadd.f32 %s76, %s77
    %s79 = sld [smem:[#allocation6 + $0x1]]
    %s80 = sld [smem:[#allocation7 + $0x1]]
    %s81 = sadd.f32 %s79, %s80
    %s82 = sld [smem:[#allocation6 + $0x2]]
    %s83 = sld [smem:[#allocation7 + $0x2]]
    %s84 = sadd.f32 %s82, %s83
    %s85 = sld [smem:[#allocation6 + $0x3]]
    %s86 = sld [smem:[#allocation7 + $0x3]]
    %s87 = sadd.f32 %s85, %s86
    %v88 = vld [vmem:[%s4] sm:$0xff]
    %v89 = vld [vmem:[%s4 + $0x8] sm:$0xff]
    %v90 = vld [vmem:[%s4 + $0x10] sm:$0xff]
    %v91 = vld [vmem:[%s4 + $0x18] sm:$0xff]
    %v92 = vld [vmem:[%s4 + $0x20] sm:$0xff]
    %v93 = vld [vmem:[%s4 + $0x28] sm:$0xff]
    %v94 = vld [vmem:[%s4 + $0x30] sm:$0xff]
    %v95 = vld [vmem:[%s4 + $0x38] sm:$0xff]
    %96 = vxpose.xlu0.b32.start [1/16] %v88, 128
    %97 = vxpose.xlu0.b32.cont [2/16] %v89, 128
    %98 = vxpose.xlu0.b32.cont [3/16] %v90, 128
    %99 = vxpose.xlu0.b32.cont [4/16] %v91, 128
    %100 = vxpose.xlu0.b32.cont [5/16] %v92, 128
    %101 = vxpose.xlu0.b32.cont [6/16] %v93, 128
    %102 = vxpose.xlu0.b32.cont [7/16] %v94, 128
    %103 = vxpose.xlu0.b32.cont [8/16] %v95, 128
    %104 = vxpose.xlu0.b32.cont [9/16] 0.0, 128
    %105 = vxpose.xlu0.b32.cont [10/16] 0.0, 128
    %106 = vxpose.xlu0.b32.cont [11/16] 0.0, 128
    %107 = vxpose.xlu0.b32.cont [12/16] 0.0, 128
    %108 = vxpose.xlu0.b32.cont [13/16] 0.0, 128
    %109 = vxpose.xlu0.b32.cont [14/16] 0.0, 128
    %110 = vxpose.xlu0.b32.cont [15/16] 0.0, 128
    %111 = vxpose.xlu0.b32.end [16/16] 0.0, 128
    %v112 = vpop.trf.xlu0
    %v113 = vpop.trf.xlu0
    %v114 = vpop.trf.xlu0
    %v115 = vpop.trf.xlu0
    %v116 = vpop.trf.xlu0
    %v117 = vpop.trf.xlu0
    %v118 = vpop.trf.xlu0
    %v119 = vpop.trf.xlu0
    %v120 = vpop.trf.xlu0
    %v121 = vpop.trf.xlu0
    %v122 = vpop.trf.xlu0
    %v123 = vpop.trf.xlu0
    %v124 = vpop.trf.xlu0
    %v125 = vpop.trf.xlu0
    %v126 = vpop.trf.xlu0
    %v127 = vpop.trf.xlu0
    %s128 = smul.f32 %s68, 0.5
    %v129 = vstv %s128
    %v130 = vmul.f32 %v112, %v129
    %v131 = vmul.f32 %v113, %v129
    %s132 = smul.f32 %s78, 0.5
    %v133 = vstv %s132
    %v134 = vadd.f32 %v130, %v133
    %v135 = vadd.f32 %v131, %v133
    %s136 = smul.f32 %s69, 0.5
    %v137 = vstv %s136
    %v138 = vmul.f32 %v112, %v137
    %v139 = vmul.f32 %v113, %v137
    %s140 = smul.f32 %s81, 0.5
    %v141 = vstv %s140
    %v142 = vadd.f32 %v138, %v141
    %v143 = vadd.f32 %v139, %v141
    %s144 = smul.f32 %s71, 0.5
    %v145 = vstv %s144
    %v146 = vmul.f32 %v112, %v145
    %v147 = vmul.f32 %v113, %v145
    %s148 = smul.f32 %s87, 0.5
    %v149 = vstv %s148
    %v150 = vadd.f32 %v146, %v149
    %v151 = vadd.f32 %v147, %v149
    %v152 = vstv %s70
    %v153 = vmul.f32 %v112, %v152
    %v154 = vmul.f32 %v113, %v152
    %v155 = vstv %s84
    %v156 = vadd.f32 %v153, %v155
    %v157 = vadd.f32 %v154, %v155
    %v159 = vrot.slane %v142, 7
    %v162 = vrot.slane %v150, 6
    %v165 = vrot.slane %v156, 5
    %vm167 = vcmask 1040384
    %v168 = vsel %vm167, %v134, %v159
    %vm169 = vcmask 1041408
    %v170 = vsel %vm169, %v168, %v162
    %vm171 = vcmask 1042432
    %v172 = vsel %vm171, %v170, %v165
    %v174 = vrot.slane %v134, 1
    %v176 = vrot.slane %v150, 7
    %v178 = vrot.slane %v156, 6
    %v180 = vsel %vm167, %v174, %v142
    %v181 = vsel %vm169, %v180, %v176
    %v182 = vsel %vm171, %v181, %v178
    %v183 = vrot.slane %v134, 2
    %v185 = vrot.slane %v142, 1
    %v187 = vrot.slane %v156, 7
    %v189 = vsel %vm167, %v183, %v185
    %v190 = vsel %vm169, %v189, %v150
    %v191 = vsel %vm171, %v190, %v187
    %v192 = vrot.slane %v134, 3
    %v194 = vrot.slane %v142, 2
    %v196 = vrot.slane %v150, 1
    %v198 = vsel %vm167, %v192, %v194
    %v199 = vsel %vm169, %v198, %v196
    %v200 = vsel %vm171, %v199, %v156
    %v201 = vrot.slane %v134, 4
    %v203 = vrot.slane %v142, 3
    %v205 = vrot.slane %v150, 2
    %v207 = vrot.slane %v156, 1
    %v209 = vsel %vm167, %v201, %v203
    %v210 = vsel %vm169, %v209, %v205
    %v211 = vsel %vm171, %v210, %v207
    %v212 = vrot.slane %v134, 5
    %v214 = vrot.slane %v142, 4
    %v216 = vrot.slane %v150, 3
    %v218 = vrot.slane %v156, 2
    %v220 = vsel %vm167, %v212, %v214
    %v221 = vsel %vm169, %v220, %v216
    %v222 = vsel %vm171, %v221, %v218
    %v223 = vrot.slane %v134, 6
    %v225 = vrot.slane %v142, 5
    %v227 = vrot.slane %v150, 4
    %v229 = vrot.slane %v156, 3
    %v231 = vsel %vm167, %v223, %v225
    %v232 = vsel %vm169, %v231, %v227
    %v233 = vsel %vm171, %v232, %v229
    %v234 = vrot.slane %v134, 7
    %v236 = vrot.slane %v142, 6
    %v238 = vrot.slane %v150, 5
    %v240 = vrot.slane %v156, 4
    %v242 = vsel %vm167, %v234, %v236
    %v243 = vsel %vm169, %v242, %v238
    %v244 = vsel %vm171, %v243, %v240
    %v246 = vrot.slane %v143, 7
    %v249 = vrot.slane %v151, 6
    %v252 = vrot.slane %v157, 5
    %v254 = vsel %vm167, %v135, %v246
    %v255 = vsel %vm169, %v254, %v249
    %v256 = vsel %vm171, %v255, %v252
    %v258 = vrot.slane %v135, 1
    %v260 = vrot.slane %v151, 7
    %v262 = vrot.slane %v157, 6
    %v264 = vsel %vm167, %v258, %v143
    %v265 = vsel %vm169, %v264, %v260
    %v266 = vsel %vm171, %v265, %v262
    %v267 = vrot.slane %v135, 2
    %v269 = vrot.slane %v143, 1
    %v271 = vrot.slane %v157, 7
    %v273 = vsel %vm167, %v267, %v269
    %v274 = vsel %vm169, %v273, %v151
    %v275 = vsel %vm171, %v274, %v271
    %v276 = vrot.slane %v135, 3
    %v278 = vrot.slane %v143, 2
    %v280 = vrot.slane %v151, 1
    %v282 = vsel %vm167, %v276, %v278
    %v283 = vsel %vm169, %v282, %v280
    %v284 = vsel %vm171, %v283, %v157
    %v285 = vrot.slane %v135, 4
    %v287 = vrot.slane %v143, 3
    %v289 = vrot.slane %v151, 2
    %v291 = vrot.slane %v157, 1
    %v293 = vsel %vm167, %v285, %v287
    %v294 = vsel %vm169, %v293, %v289
    %v295 = vsel %vm171, %v294, %v291
    %v296 = vrot.slane %v135, 5
    %v298 = vrot.slane %v143, 4
    %v300 = vrot.slane %v151, 3
    %v302 = vrot.slane %v157, 2
    %v304 = vsel %vm167, %v296, %v298
    %v305 = vsel %vm169, %v304, %v300
    %v306 = vsel %vm171, %v305, %v302
    %v307 = vrot.slane %v135, 6
    %v309 = vrot.slane %v143, 5
    %v311 = vrot.slane %v151, 4
    %v313 = vrot.slane %v157, 3
    %v315 = vsel %vm167, %v307, %v309
    %v316 = vsel %vm169, %v315, %v311
    %v317 = vsel %vm171, %v316, %v313
    %v318 = vrot.slane %v135, 7
    %v320 = vrot.slane %v143, 6
    %v322 = vrot.slane %v151, 5
    %v324 = vrot.slane %v157, 4
    %v326 = vsel %vm167, %v318, %v320
    %v327 = vsel %vm169, %v326, %v322
    %v328 = vsel %vm171, %v327, %v324
    %s329 = smul.f32 %s72, 0.5
    %v330 = vstv %s329
    %s331 = smul.f32 %s73, 0.5
    %v332 = vstv %s331
    %s333 = smul.f32 %s75, 0.5
    %v334 = vstv %s333
    %v335 = vstv %s74
    %v336 = vsel %vm167, %v330, %v332
    %v337 = vsel %vm169, %v336, %v334
    %v338 = vsel %vm171, %v337, %v335
    %v339 = vsel %vm171, 0.5, 1.0
    %v340 = vsel %vm171, 0.5, 0.0
    %v341 = vmul.f32 %v338, 0.0
    %v342 = vadd.f32 %v172, %v341
    %v343 = vtanh.pop %v342
    %v344 = vmul.f32 %v343, %v339
    %v345 = vadd.f32 %v344, %v340
    %v346 = vmul.f32 %v345, 0.0
    %v348 = vrot.slane %v345, 3
    %v350 = vmul.f32 %v345, %v348
    %v352 = vrot.slane %v350, 7
    %v354 = vadd.f32 %v346, %v352
    %v355 = vtanh.pop %v354
    %v357 = vrot.slane %v355, 7
    %v359 = vmul.f32 %v345, %v357
    %v360 = vlaneseq
    %v361 = vshrl.u32 %v360, 7
    %v362 = vsub.s32 2, %v361
    %v363 = vrot.slane %v359, %v362
    %v364 = vmul.f32 %v363, %v338
    %v365 = vadd.f32 %v182, %v364
    %v366 = vtanh.pop %v365
    %v367 = vmul.f32 %v366, %v339
    %v368 = vadd.f32 %v367, %v340
    %v369 = vmul.f32 %v368, %v354
    %v371 = vrot.slane %v368, 3
    %v373 = vmul.f32 %v368, %v371
    %v375 = vrot.slane %v373, 7
    %v377 = vadd.f32 %v369, %v375
    %v378 = vtanh.pop %v377
    %v380 = vrot.slane %v378, 7
    %v382 = vmul.f32 %v368, %v380
    %v383 = vlaneseq
    %v384 = vshrl.u32 %v383, 7
    %v385 = vsub.s32 2, %v384
    %v386 = vrot.slane %v382, %v385
    %v387 = vmul.f32 %v386, %v338
    %v388 = vadd.f32 %v191, %v387
    %v389 = vtanh.pop %v388
    %v390 = vmul.f32 %v389, %v339
    %v391 = vadd.f32 %v390, %v340
    %v392 = vmul.f32 %v391, %v377
    %v394 = vrot.slane %v391, 3
    %v396 = vmul.f32 %v391, %v394
    %v398 = vrot.slane %v396, 7
    %v400 = vadd.f32 %v392, %v398
    %v401 = vtanh.pop %v400
    %v403 = vrot.slane %v401, 7
    %v405 = vmul.f32 %v391, %v403
    %v406 = vlaneseq
    %v407 = vshrl.u32 %v406, 7
    %v408 = vsub.s32 2, %v407
    %v409 = vrot.slane %v405, %v408
    %v410 = vmul.f32 %v409, %v338
    %v411 = vadd.f32 %v200, %v410
    %v412 = vtanh.pop %v411
    %v413 = vmul.f32 %v412, %v339
    %v414 = vadd.f32 %v413, %v340
    %v415 = vmul.f32 %v414, %v400
    %v417 = vrot.slane %v414, 3
    %v419 = vmul.f32 %v414, %v417
    %v421 = vrot.slane %v419, 7
    %v423 = vadd.f32 %v415, %v421
    %v424 = vtanh.pop %v423
    %v426 = vrot.slane %v424, 7
    %v428 = vmul.f32 %v414, %v426
    %v429 = vlaneseq
    %v430 = vshrl.u32 %v429, 7
    %v431 = vsub.s32 2, %v430
    %v432 = vrot.slane %v428, %v431
    %v433 = vmul.f32 %v432, %v338
    %v434 = vadd.f32 %v211, %v433
    %v435 = vtanh.pop %v434
    %v436 = vmul.f32 %v435, %v339
    %v437 = vadd.f32 %v436, %v340
    %v438 = vmul.f32 %v437, %v423
    %v440 = vrot.slane %v437, 3
    %v442 = vmul.f32 %v437, %v440
    %v444 = vrot.slane %v442, 7
    %v446 = vadd.f32 %v438, %v444
    %v447 = vtanh.pop %v446
    %v449 = vrot.slane %v447, 7
    %v451 = vmul.f32 %v437, %v449
    %v452 = vlaneseq
    %v453 = vshrl.u32 %v452, 7
    %v454 = vsub.s32 2, %v453
    %v455 = vrot.slane %v451, %v454
    %v456 = vmul.f32 %v455, %v338
    %v457 = vadd.f32 %v222, %v456
    %v458 = vtanh.pop %v457
    %v459 = vmul.f32 %v458, %v339
    %v460 = vadd.f32 %v459, %v340
    %v461 = vmul.f32 %v460, %v446
    %v463 = vrot.slane %v460, 3
    %v465 = vmul.f32 %v460, %v463
    %v467 = vrot.slane %v465, 7
    %v469 = vadd.f32 %v461, %v467
    %v470 = vtanh.pop %v469
    %v472 = vrot.slane %v470, 7
    %v474 = vmul.f32 %v460, %v472
    %v475 = vlaneseq
    %v476 = vshrl.u32 %v475, 7
    %v477 = vsub.s32 2, %v476
    %v478 = vrot.slane %v474, %v477
    %v479 = vmul.f32 %v478, %v338
    %v480 = vadd.f32 %v233, %v479
    %v481 = vtanh.pop %v480
    %v482 = vmul.f32 %v481, %v339
    %v483 = vadd.f32 %v482, %v340
    %v484 = vmul.f32 %v483, %v469
    %v486 = vrot.slane %v483, 3
    %v488 = vmul.f32 %v483, %v486
    %v490 = vrot.slane %v488, 7
    %v492 = vadd.f32 %v484, %v490
    %v493 = vtanh.pop %v492
    %v495 = vrot.slane %v493, 7
    %v497 = vmul.f32 %v483, %v495
    %v498 = vlaneseq
    %v499 = vshrl.u32 %v498, 7
    %v500 = vsub.s32 2, %v499
    %v501 = vrot.slane %v497, %v500
    %v502 = vmul.f32 %v501, %v338
    %v503 = vadd.f32 %v244, %v502
    %v504 = vtanh.pop %v503
    %v505 = vmul.f32 %v504, %v339
    %v506 = vadd.f32 %v505, %v340
    %v507 = vmul.f32 %v506, %v492
    %v509 = vrot.slane %v506, 3
    %v511 = vmul.f32 %v506, %v509
    %v513 = vrot.slane %v511, 7
    %v515 = vadd.f32 %v507, %v513
    %v516 = vtanh.pop %v515
    %v518 = vrot.slane %v516, 7
    %v520 = vmul.f32 %v506, %v518
    %v521 = vlaneseq
    %v522 = vshrl.u32 %v521, 7
    %v523 = vsub.s32 2, %v522
    %v524 = vrot.slane %v520, %v523
    %v525 = vmul.f32 %v524, %v338
    %v526 = vadd.f32 %v256, %v525
    %v527 = vtanh.pop %v526
    %v528 = vmul.f32 %v527, %v339
    %v529 = vadd.f32 %v528, %v340
    %v530 = vmul.f32 %v529, %v515
    %v532 = vrot.slane %v529, 3
    %v534 = vmul.f32 %v529, %v532
    %v536 = vrot.slane %v534, 7
    %v538 = vadd.f32 %v530, %v536
    %v539 = vtanh.pop %v538
    %v541 = vrot.slane %v539, 7
    %v543 = vmul.f32 %v529, %v541
    %v544 = vlaneseq
    %v545 = vshrl.u32 %v544, 7
    %v546 = vsub.s32 2, %v545
    %v547 = vrot.slane %v543, %v546
    %v548 = vmul.f32 %v547, %v338
    %v549 = vadd.f32 %v266, %v548
    %v550 = vtanh.pop %v549
    %v551 = vmul.f32 %v550, %v339
    %v552 = vadd.f32 %v551, %v340
    %v553 = vmul.f32 %v552, %v538
    %v555 = vrot.slane %v552, 3
    %v557 = vmul.f32 %v552, %v555
    %v559 = vrot.slane %v557, 7
    %v561 = vadd.f32 %v553, %v559
    %v562 = vtanh.pop %v561
    %v564 = vrot.slane %v562, 7
    %v566 = vmul.f32 %v552, %v564
    %v567 = vlaneseq
    %v568 = vshrl.u32 %v567, 7
    %v569 = vsub.s32 2, %v568
    %v570 = vrot.slane %v566, %v569
    %v571 = vmul.f32 %v570, %v338
    %v572 = vadd.f32 %v275, %v571
    %v573 = vtanh.pop %v572
    %v574 = vmul.f32 %v573, %v339
    %v575 = vadd.f32 %v574, %v340
    %v576 = vmul.f32 %v575, %v561
    %v578 = vrot.slane %v575, 3
    %v580 = vmul.f32 %v575, %v578
    %v582 = vrot.slane %v580, 7
    %v584 = vadd.f32 %v576, %v582
    %v585 = vtanh.pop %v584
    %v587 = vrot.slane %v585, 7
    %v589 = vmul.f32 %v575, %v587
    %v590 = vlaneseq
    %v591 = vshrl.u32 %v590, 7
    %v592 = vsub.s32 2, %v591
    %v593 = vrot.slane %v589, %v592
    %v594 = vmul.f32 %v593, %v338
    %v595 = vadd.f32 %v284, %v594
    %v596 = vtanh.pop %v595
    %v597 = vmul.f32 %v596, %v339
    %v598 = vadd.f32 %v597, %v340
    %v599 = vmul.f32 %v598, %v584
    %v601 = vrot.slane %v598, 3
    %v603 = vmul.f32 %v598, %v601
    %v605 = vrot.slane %v603, 7
    %v607 = vadd.f32 %v599, %v605
    %v608 = vtanh.pop %v607
    %v610 = vrot.slane %v608, 7
    %v612 = vmul.f32 %v598, %v610
    %v613 = vlaneseq
    %v614 = vshrl.u32 %v613, 7
    %v615 = vsub.s32 2, %v614
    %v616 = vrot.slane %v612, %v615
    %v617 = vmul.f32 %v616, %v338
    %v618 = vadd.f32 %v295, %v617
    %v619 = vtanh.pop %v618
    %v620 = vmul.f32 %v619, %v339
    %v621 = vadd.f32 %v620, %v340
    %v622 = vmul.f32 %v621, %v607
    %v624 = vrot.slane %v621, 3
    %v626 = vmul.f32 %v621, %v624
    %v628 = vrot.slane %v626, 7
    %v630 = vadd.f32 %v622, %v628
    %v631 = vtanh.pop %v630
    %v633 = vrot.slane %v631, 7
    %v635 = vmul.f32 %v621, %v633
    %v636 = vlaneseq
    %v637 = vshrl.u32 %v636, 7
    %v638 = vsub.s32 2, %v637
    %v639 = vrot.slane %v635, %v638
    %v640 = vmul.f32 %v639, %v338
    %v641 = vadd.f32 %v306, %v640
    %v642 = vtanh.pop %v641
    %v643 = vmul.f32 %v642, %v339
    %v644 = vadd.f32 %v643, %v340
    %v645 = vmul.f32 %v644, %v630
    %v647 = vrot.slane %v644, 3
    %v649 = vmul.f32 %v644, %v647
    %v651 = vrot.slane %v649, 7
    %v653 = vadd.f32 %v645, %v651
    %v654 = vtanh.pop %v653
    %v656 = vrot.slane %v654, 7
    %v658 = vmul.f32 %v644, %v656
    %v659 = vlaneseq
    %v660 = vshrl.u32 %v659, 7
    %v661 = vsub.s32 2, %v660
    %v662 = vrot.slane %v658, %v661
    %v663 = vmul.f32 %v662, %v338
    %v664 = vadd.f32 %v317, %v663
    %v665 = vtanh.pop %v664
    %v666 = vmul.f32 %v665, %v339
    %v667 = vadd.f32 %v666, %v340
    %v668 = vmul.f32 %v667, %v653
    %v670 = vrot.slane %v667, 3
    %v672 = vmul.f32 %v667, %v670
    %v674 = vrot.slane %v672, 7
    %v676 = vadd.f32 %v668, %v674
    %v677 = vtanh.pop %v676
    %v679 = vrot.slane %v677, 7
    %v681 = vmul.f32 %v667, %v679
    %v682 = vlaneseq
    %v683 = vshrl.u32 %v682, 7
    %v684 = vsub.s32 2, %v683
    %v685 = vrot.slane %v681, %v684
    %v686 = vmul.f32 %v685, %v338
    %v687 = vadd.f32 %v328, %v686
    %v688 = vtanh.pop %v687
    %v689 = vmul.f32 %v688, %v339
    %v690 = vadd.f32 %v689, %v340
    %v691 = vmul.f32 %v690, %v676
    %v693 = vrot.slane %v690, 3
    %v695 = vmul.f32 %v690, %v693
    %v697 = vrot.slane %v695, 7
    %v699 = vadd.f32 %v691, %v697
    %v700 = vtanh.pop %v699
    %v702 = vrot.slane %v700, 7
    %v704 = vmul.f32 %v690, %v702
    %v706 = vrot.slane %v359, 2
    %v709 = vrot.slane %v382, 1
    %v712 = vrot.slane %v428, 7
    %v715 = vrot.slane %v451, 6
    %v718 = vrot.slane %v474, 5
    %v721 = vrot.slane %v497, 4
    %v724 = vrot.slane %v520, 3
    %v727 = vrot.slane %v543, 2
    %v730 = vrot.slane %v566, 1
    %v733 = vrot.slane %v612, 7
    %v736 = vrot.slane %v635, 6
    %v739 = vrot.slane %v658, 5
    %v742 = vrot.slane %v681, 4
    %v745 = vrot.slane %v704, 3
    %v747 = vsel %vm167, %v706, %v709
    %v748 = vsel %vm169, %v747, %v405
    %v749 = vsel %vm171, %v748, %v712
    %vm750 = vcmask 1043456
    %v751 = vsel %vm750, %v749, %v715
    %vm752 = vcmask 1044480
    %v753 = vsel %vm752, %v751, %v718
    %vm754 = vcmask 1045504
    %v755 = vsel %vm754, %v753, %v721
    %vm756 = vcmask 1046528
    %v757 = vsel %vm756, %v755, %v724
    %v758 = vsel %vm167, %v727, %v730
    %v759 = vsel %vm169, %v758, %v589
    %v760 = vsel %vm171, %v759, %v733
    %v761 = vsel %vm750, %v760, %v736
    %v762 = vsel %vm752, %v761, %v739
    %v763 = vsel %vm754, %v762, %v742
    %v764 = vsel %vm756, %v763, %v745
    %765 = vxpose.xlu0.b32.start [1/16] %v757, 128
    %766 = vxpose.xlu0.b32.cont [2/16] %v764, 128
    %767 = vxpose.xlu0.b32.cont [3/16] 0.0, 128
    %768 = vxpose.xlu0.b32.cont [4/16] 0.0, 128
    %769 = vxpose.xlu0.b32.cont [5/16] 0.0, 128
    %770 = vxpose.xlu0.b32.cont [6/16] 0.0, 128
    %771 = vxpose.xlu0.b32.cont [7/16] 0.0, 128
    %772 = vxpose.xlu0.b32.cont [8/16] 0.0, 128
    %773 = vxpose.xlu0.b32.cont [9/16] 0.0, 128
    %774 = vxpose.xlu0.b32.cont [10/16] 0.0, 128
    %775 = vxpose.xlu0.b32.cont [11/16] 0.0, 128
    %776 = vxpose.xlu0.b32.cont [12/16] 0.0, 128
    %777 = vxpose.xlu0.b32.cont [13/16] 0.0, 128
    %778 = vxpose.xlu0.b32.cont [14/16] 0.0, 128
    %779 = vxpose.xlu0.b32.cont [15/16] 0.0, 128
    %780 = vxpose.xlu0.b32.end [16/16] 0.0, 128
    %v781 = vpop.trf.xlu0
    %v782 = vpop.trf.xlu0
    %v783 = vpop.trf.xlu0
    %v784 = vpop.trf.xlu0
    %v785 = vpop.trf.xlu0
    %v786 = vpop.trf.xlu0
    %v787 = vpop.trf.xlu0
    %v788 = vpop.trf.xlu0
    %v789 = vpop.trf.xlu0
    %v790 = vpop.trf.xlu0
    %v791 = vpop.trf.xlu0
    %v792 = vpop.trf.xlu0
    %v793 = vpop.trf.xlu0
    %v794 = vpop.trf.xlu0
    %v795 = vpop.trf.xlu0
    %v796 = vpop.trf.xlu0
    %vm797 = vcmask 130048
    %798 = vst.msk [vmem:[%s5] sm:$0xff] %vm797, %v781
    %799 = vst.msk [vmem:[%s5 + $0x8] sm:$0xff] %vm797, %v782
    %800 = vst.msk [vmem:[%s5 + $0x10] sm:$0xff] %vm797, %v783
    %801 = vst.msk [vmem:[%s5 + $0x18] sm:$0xff] %vm797, %v784
    %802 = vst.msk [vmem:[%s5 + $0x20] sm:$0xff] %vm797, %v785
    %803 = vst.msk [vmem:[%s5 + $0x28] sm:$0xff] %vm797, %v786
    %804 = vst.msk [vmem:[%s5 + $0x30] sm:$0xff] %vm797, %v787
    %805 = vst.msk [vmem:[%s5 + $0x38] sm:$0xff] %vm797, %v788
    // Predicated region
    $region38: #{tpu_custom_call.1} parent=1 // pred_check
      _
    $region39: #{tpu_custom_call.1} parent=1 // pred_check_branch
      %807 = sbr.rel (0) target = $region41
    $region40: #{tpu_custom_call.1} parent=1 // pred_region
      _
    $region41: #{tpu_custom_call.1} parent=1 // pred_fallthru
      _
    // Predicated region
    $region42: #{tpu_custom_call.1} parent=1 // pred_check
      _
    $region43: #{tpu_custom_call.1} parent=1 // pred_check_branch
      %809 = sbr.rel (0) target = $region45
    $region44: #{tpu_custom_call.1} parent=1 // pred_region
      _
    $region45: #{tpu_custom_call.1} parent=1 // pred_fallthru
      _
    %810 = vsyncpa [#allocation3], 1
    %811 = vsyncpa [#allocation5], 1
    %812 = vsyncpa [#allocation8], 1

</llo_original>
